<compile_context>
chip_gen: v7x
topology: tpu7x:2x2x1
jax: 0.10.0
libtpu: 0.0.40
codegen_flags: <defaults>
</compile_context>

<pallas_src>
import jax
import jax.numpy as jnp
from jax.experimental import pallas as pl
from jax.experimental.pallas import tpu as pltpu

# ---- model hyperparameters (small, consistent with the module) -------------
B        = 8          # batch (pairs per call in the demo)
D_IN     = 32         # flattened scene feature size (embedding input)
F_EMBED  = 32         # embedding output features
LAYERS   = (32, 16)   # MLP hidden layer widths
N_OUT    = 2          # "different" / "same" scores

LANE  = 128            # TPU lane width: all weight lane dims padded to this
WROWS = 128            # weight-slab rows (bf16 => 32 KB total)

# Row offsets inside the slab.  All starts are multiples of 16 so every slice
# is aligned to the bf16 (16,128) memory tile (zero-cost static ref views).
WA_R, B1_R = 0,  32    # fused We@W1 [32,32] ; b1 [32]
W2_R, B2_R = 48, 80    # W2 [32,16]          ; b2 [16]
WO_R, BO_R = 96, 112   # Wo [16,2]           ; bo [2]


def _mlp_double_kernel(x1_ref, x2_ref, w_ref, o_ref):
    # x1_ref/x2_ref: [TB, 32] f32   w_ref: [128, 128] bf16   o_ref: [TB, 128] f32
    dx = x1_ref[...] - x2_ref[...]                       # f32; embedding bias cancels

    # layer 1: fused (We@W1), K=32
    wa = w_ref[WA_R:WA_R + D_IN, :]                      # (32,128) bf16, aligned view
    b1 = w_ref[B1_R:B1_R + 1, :].astype(jnp.float32)     # (1,128)
    h = jnp.dot(dx.astype(jnp.bfloat16), wa,
                preferred_element_type=jnp.float32) + b1
    h = jnp.maximum(h, 0.0)                              # padded lanes stay exactly 0

    # layer 2: K=32 (only first 32 lanes of h are valid)
    w2 = w_ref[W2_R:W2_R + LAYERS[0], :]
    b2 = w_ref[B2_R:B2_R + 1, :].astype(jnp.float32)
    h = jnp.dot(h[:, :LAYERS[0]].astype(jnp.bfloat16), w2,
                preferred_element_type=jnp.float32) + b2
    h = jnp.maximum(h, 0.0)

    # output layer: K=16
    wo = w_ref[WO_R:WO_R + LAYERS[1], :]
    bo = w_ref[BO_R:BO_R + 1, :].astype(jnp.float32)
    out = jnp.dot(h[:, :LAYERS[1]].astype(jnp.bfloat16), wo,
                  preferred_element_type=jnp.float32) + bo

    o_ref[...] = out.astype(o_ref.dtype)                 # full-lane unmasked store


def pack_params(params):
    """One-time host-side packing: fuse We@W1 (be cancels), fold biases in,
    zero-pad lanes to 128, and store everything as a single bf16 [128,128] slab."""
    we, be, w1, b1, w2, b2, wo, bo = params
    wa = we @ w1                                          # [D_IN, LAYERS[0]]
    slab = jnp.zeros((WROWS, LANE), jnp.float32)
    slab = slab.at[WA_R:WA_R + D_IN,      :LAYERS[0]].set(wa)
    slab = slab.at[B1_R,                  :LAYERS[0]].set(b1.reshape(-1))
    slab = slab.at[W2_R:W2_R + LAYERS[0], :LAYERS[1]].set(w2)
    slab = slab.at[B2_R,                  :LAYERS[1]].set(b2.reshape(-1))
    slab = slab.at[WO_R:WO_R + LAYERS[1], :N_OUT].set(wo)
    slab = slab.at[BO_R,                  :N_OUT].set(bo.reshape(-1))
    return slab.astype(jnp.bfloat16)


def mlp_double_forward(x1, x2, w_slab):
    """Fused MLPDouble forward on TPU via Pallas (3 operands, 3 matmuls, 1 call)."""
    bsz, d = x1.shape
    assert d == D_IN and x2.shape == x1.shape
    tb = bsz if bsz <= 256 else 256                      # rows per grid step
    assert tb % 8 == 0 and bsz % tb == 0, "batch must be a multiple of 8"
    grid = (bsz // tb,)

    out_pad = pl.pallas_call(
        _mlp_double_kernel,
        grid=grid,
        in_specs=[
            pl.BlockSpec((tb, D_IN), lambda i: (i, 0)),       # x1 tile
            pl.BlockSpec((tb, D_IN), lambda i: (i, 0)),       # x2 tile
            pl.BlockSpec((WROWS, LANE), lambda i: (0, 0)),    # weight slab (resident)
        ],
        out_specs=pl.BlockSpec((tb, LANE), lambda i: (i, 0)),
        out_shape=jax.ShapeDtypeStruct((bsz, LANE), jnp.float32),
        compiler_params=pltpu.CompilerParams(
            dimension_semantics=("parallel",)),               # megacore-shardable on v7x
        cost_estimate=pl.CostEstimate(
            flops=2 * bsz * LANE * (D_IN + LAYERS[0] + LAYERS[1]),
            transcendentals=0,
            bytes_accessed=4 * (x1.size + x2.size + bsz * LANE) + 2 * WROWS * LANE,
        ),
    )(x1, x2, w_slab)
    return out_pad[:, :N_OUT]


def init_params(key):
    """Deterministic parameter init (weights stored as [in, out])."""
    ks = jax.random.split(key, 8)

    def lin(kw, kb, fin, fout):
        bound = 1.0 / jnp.sqrt(jnp.float32(fin))
        w = jax.random.uniform(kw, (fin, fout), jnp.float32, -bound, bound)
        b = jax.random.uniform(kb, (1, fout), jnp.float32, -bound, bound)
        return w, b

    we, be = lin(ks[0], ks[1], D_IN,      F_EMBED)
    w1, b1 = lin(ks[2], ks[3], F_EMBED,   LAYERS[0])
    w2, b2 = lin(ks[4], ks[5], LAYERS[0], LAYERS[1])
    wo, bo = lin(ks[6], ks[7], LAYERS[1], N_OUT)
    return (we, be, w1, b1, w2, b2, wo, bo)


def reference_forward(x1, x2, params):
    """Pure-JAX f32 reference of the original module math (unfused, with `be`)."""
    we, be, w1, b1, w2, b2, wo, bo = params
    z = (x1 @ we + be) - (x2 @ we + be)
    h = jnp.maximum(z @ w1 + b1, 0.0)
    h = jnp.maximum(h @ w2 + b2, 0.0)
    return h @ wo + bo


def reference_from_packed(x1, x2, w_slab):
    """Reference that emulates the kernel's bf16-operand / f32-accumulate numerics."""
    w = w_slab.astype(jnp.float32)
    bf = lambda a: a.astype(jnp.bfloat16).astype(jnp.float32)
    wa, b1 = w[WA_R:WA_R + D_IN, :LAYERS[0]],      w[B1_R, :LAYERS[0]]
    w2, b2 = w[W2_R:W2_R + LAYERS[0], :LAYERS[1]], w[B2_R, :LAYERS[1]]
    wo, bo = w[WO_R:WO_R + LAYERS[1], :N_OUT],     w[BO_R, :N_OUT]
    h = jnp.maximum(bf(x1 - x2) @ wa + b1, 0.0)
    h = jnp.maximum(bf(h) @ w2 + b2, 0.0)
    return bf(h) @ wo + bo


if __name__ == "__main__":
    key = jax.random.PRNGKey(0)
    k_x1, k_x2, k_p = jax.random.split(key, 3)

    x1 = jax.random.normal(k_x1, (B, D_IN), jnp.float32)
    x2 = jax.random.normal(k_x2, (B, D_IN), jnp.float32)
    params = init_params(k_p)

    w_slab = pack_params(params)              # one-time host-side fusion + packing

    fwd = jax.jit(mlp_double_forward)         # keep the tiny call inside a jit boundary
    out = jax.block_until_ready(fwd(x1, x2, w_slab))
    assert out.shape == (B, N_OUT)

    # Kernel-correctness check: tight match vs a reference using identical
    # bf16-operand / f32-accumulate numerics.
    ref_q = reference_from_packed(x1, x2, w_slab)
    assert jnp.allclose(out, ref_q, atol=2e-2, rtol=2e-2), "mismatch vs bf16-emulated reference"

    # Semantics sanity check vs the exact f32 module math: bf16 MXU operands
    # (review-recommended) introduce ~1e-2 drift, hence the loose tolerance.
    ref32 = reference_forward(x1, x2, params)
    assert jnp.allclose(out, ref32, atol=1.5e-1, rtol=1.5e-1), "mismatch vs f32 module reference"

    print("KERNEL_OK")
</pallas_src>

<mosaic_0001>
module attributes {stable_mosaic.version = 11 : i64} {
  func.func @_mlp_double_kernel(%arg0: i32, %arg1: memref<8x32xf32, #tpu.memory_space<vmem>>, %arg2: memref<8x32xf32, #tpu.memory_space<vmem>>, %arg3: memref<128x128xbf16, #tpu.memory_space<vmem>>, %arg4: memref<8x128xf32, #tpu.memory_space<vmem>>) attributes {dimension_semantics = [#tpu.dimension_semantics<parallel>], iteration_bounds = array<i64: 1>, scalar_prefetch = 0 : i64, scratch_operands = 0 : i64, tpu.core_type = #tpu.core_type<tc>, window_params = [{transform_indices = @transform_0, window_bounds = array<i64: 8, 32>}, {transform_indices = @transform_1, window_bounds = array<i64: 8, 32>}, {pipeline_mode = #tpu.pipeline_mode<synchronous>, transform_indices = @transform_2, window_bounds = array<i64: 128, 128>}, {transform_indices = @transform_3, window_bounds = array<i64: 8, 128>}]} {
    %c0 = arith.constant 0 : index
    %c0_0 = arith.constant 0 : index
    %0 = vector.load %arg1[%c0, %c0_0] : memref<8x32xf32, #tpu.memory_space<vmem>>, vector<8x32xf32>
    %c0_1 = arith.constant 0 : index
    %c0_2 = arith.constant 0 : index
    %1 = vector.load %arg2[%c0_1, %c0_2] : memref<8x32xf32, #tpu.memory_space<vmem>>, vector<8x32xf32>
    %2 = arith.subf %0, %1 : vector<8x32xf32>
    %c0_3 = arith.constant 0 : index
    %c0_4 = arith.constant 0 : index
    %3 = vector.load %arg3[%c0_3, %c0_4] : memref<128x128xbf16, #tpu.memory_space<vmem>>, vector<32x128xbf16>
    %c32 = arith.constant 32 : index
    %c0_5 = arith.constant 0 : index
    %4 = vector.load %arg3[%c32, %c0_5] : memref<128x128xbf16, #tpu.memory_space<vmem>>, vector<1x128xbf16>
    %5 = arith.extf %4 : vector<1x128xbf16> to vector<1x128xf32>
    %6 = arith.truncf %2 : vector<8x32xf32> to vector<8x32xbf16>
    %cst = arith.constant dense<0.000000e+00> : vector<8x128xf32>
    %7 = tpu.matmul %6, %3, %cst {dimension_numbers = #tpu.dot_dimension_numbers<[1], [0], [0], [1], [0, 0, 1, 1], [], []>} : vector<8x32xbf16>, vector<32x128xbf16>, vector<8x128xf32> -> vector<8x128xf32>
    %8 = vector.broadcast %5 : vector<1x128xf32> to vector<8x128xf32>
    %9 = arith.addf %7, %8 : vector<8x128xf32>
    %cst_6 = arith.constant 0.000000e+00 : f32
    %10 = vector.broadcast %cst_6 : f32 to vector<8x128xf32>
    %11 = arith.maximumf %9, %10 : vector<8x128xf32>
    %c48 = arith.constant 48 : index
    %c0_7 = arith.constant 0 : index
    %12 = vector.load %arg3[%c48, %c0_7] : memref<128x128xbf16, #tpu.memory_space<vmem>>, vector<32x128xbf16>
    %c80 = arith.constant 80 : index
    %c0_8 = arith.constant 0 : index
    %13 = vector.load %arg3[%c80, %c0_8] : memref<128x128xbf16, #tpu.memory_space<vmem>>, vector<1x128xbf16>
    %14 = arith.extf %13 : vector<1x128xbf16> to vector<1x128xf32>
    %15 = vector.extract_strided_slice %11 {offsets = [0, 0], sizes = [8, 32], strides = [1, 1]} : vector<8x128xf32> to vector<8x32xf32>
    %16 = arith.truncf %15 : vector<8x32xf32> to vector<8x32xbf16>
    %cst_9 = arith.constant dense<0.000000e+00> : vector<8x128xf32>
    %17 = tpu.matmul %16, %12, %cst_9 {dimension_numbers = #tpu.dot_dimension_numbers<[1], [0], [0], [1], [0, 0, 1, 1], [], []>} : vector<8x32xbf16>, vector<32x128xbf16>, vector<8x128xf32> -> vector<8x128xf32>
    %18 = vector.broadcast %14 : vector<1x128xf32> to vector<8x128xf32>
    %19 = arith.addf %17, %18 : vector<8x128xf32>
    %cst_10 = arith.constant 0.000000e+00 : f32
    %20 = vector.broadcast %cst_10 : f32 to vector<8x128xf32>
    %21 = arith.maximumf %19, %20 : vector<8x128xf32>
    %c96 = arith.constant 96 : index
    %c0_11 = arith.constant 0 : index
    %22 = vector.load %arg3[%c96, %c0_11] : memref<128x128xbf16, #tpu.memory_space<vmem>>, vector<16x128xbf16>
    %c112 = arith.constant 112 : index
    %c0_12 = arith.constant 0 : index
    %23 = vector.load %arg3[%c112, %c0_12] : memref<128x128xbf16, #tpu.memory_space<vmem>>, vector<1x128xbf16>
    %24 = arith.extf %23 : vector<1x128xbf16> to vector<1x128xf32>
    %25 = vector.extract_strided_slice %21 {offsets = [0, 0], sizes = [8, 16], strides = [1, 1]} : vector<8x128xf32> to vector<8x16xf32>
    %26 = arith.truncf %25 : vector<8x16xf32> to vector<8x16xbf16>
    %cst_13 = arith.constant dense<0.000000e+00> : vector<8x128xf32>
    %27 = tpu.matmul %26, %22, %cst_13 {dimension_numbers = #tpu.dot_dimension_numbers<[1], [0], [0], [1], [0, 0, 1, 1], [], []>} : vector<8x16xbf16>, vector<16x128xbf16>, vector<8x128xf32> -> vector<8x128xf32>
    %28 = vector.broadcast %24 : vector<1x128xf32> to vector<8x128xf32>
    %29 = arith.addf %27, %28 : vector<8x128xf32>
    %c0_14 = arith.constant 0 : index
    %c0_15 = arith.constant 0 : index
    %30 = vector.load %arg4[%c0_14, %c0_15] : memref<8x128xf32, #tpu.memory_space<vmem>>, vector<8x128xf32>
    tpu.vector_store %arg4[%c0_14, %c0_15], %29 {strides = array<i32>} : memref<8x128xf32, #tpu.memory_space<vmem>>, vector<8x128xf32>,
    return
  }
  func.func @transform_0(%arg0: i32) -> (i32, i32) {
    %c0_i32 = arith.constant 0 : i32
    %c0_i32_0 = arith.constant 0 : i32
    return %arg0, %c0_i32 : i32, i32
  }
  func.func @transform_1(%arg0: i32) -> (i32, i32) {
    %c0_i32 = arith.constant 0 : i32
    %c0_i32_0 = arith.constant 0 : i32
    return %arg0, %c0_i32 : i32, i32
  }
  func.func @transform_2(%arg0: i32) -> (i32, i32) {
    %c0_i32 = arith.constant 0 : i32
    %c0_i32_0 = arith.constant 0 : i32
    %c0_i32_1 = arith.constant 0 : i32
    return %c0_i32, %c0_i32_0 : i32, i32
  }
  func.func @transform_3(%arg0: i32) -> (i32, i32) {
    %c0_i32 = arith.constant 0 : i32
    %c0_i32_0 = arith.constant 0 : i32
    return %arg0, %c0_i32 : i32, i32
  }
}

</mosaic_0001>

<llo_original>
// kernel: mlp_double_forward.1
$region0: #{mlp_double_forward.1}
  #allocation0 [shape = 'u32[]', space=smem, size = 0x4, offset = 0x4, fixed_abs, tag = 'smem constant byte address 0x4 - core index']
  #allocation1 [shape = 'u32[144,128]{1,0:T(1,128)}', space=vmem, size = 0x12000, scoped, tag = 'internal scratch']
  %s0 = inlined_call_operand.hbm [shape: f32[8,32], index: 0, kind: input, shape index: {}]
  %s1 = inlined_call_operand.hbm [shape: f32[8,32], index: 1, kind: input, shape index: {}]
  %s2 = inlined_call_operand.hbm [shape: bf16[128,128], index: 2, kind: input, shape index: {}]
  %s3 = inlined_call_operand.vmem [shape: f32[8,128], index: 3, kind: output, shape index: {}]
  %s4 = sld [smem:[#allocation0]]
  $region34: #{mlp_double_forward.1} parent=0
    _
  %s6 = ssub.s32 1, %s4
  %s7 = scalar_select 0, %s6, %s4
  $region1: #{mlp_double_forward.1} parent=0
    #allocation2 [shape = 'u8[4096]{0}', space=vmem, size = 0x1000, scoped, tag = 'input window, operand 0, single buffered']
    #allocation3 [shape = 's32[1]{0}', space=sflag, size = 0x4, scoped, tag = 'scoped memory for mlp_double_forward.1']
    #allocation4 [shape = 'u8[4096]{0}', space=vmem, size = 0x1000, scoped, tag = 'input window, operand 1, single buffered']
    #allocation5 [shape = 's32[1]{0}', space=sflag, size = 0x4, scoped, tag = 'scoped memory for mlp_double_forward.1']
    #allocation6 [shape = 'u8[32768]{0}', space=vmem, size = 0x8000, scoped, tag = 'input window, operand 2, single buffered']
    %8 = vsyncpa [#allocation3], 0
    %9 = vsyncpa [#allocation5], 0
    // Predicated region
    $region2: #{mlp_double_forward.1} parent=1 // pred_check
      _
    $region3: #{mlp_double_forward.1} parent=1 // pred_check_branch
      %11 = sbr.rel (0) target = $region5
    $region4: #{mlp_double_forward.1} parent=1 // pred_region
      %s13 = ssub.s32 128, 128
      %14 = vsyncadd [#allocation3], %s13
      %s16 = sshll.u32 [#allocation2], 4
      %s17 = int_to_ptr.vmem [resolvable:$true] %s16
      %19 = dma.hbm_to_vmem [thread:$0]  %s0, 128, %s17, [#allocation3]
    $region5: #{mlp_double_forward.1} parent=1 // pred_fallthru
      _
    // Predicated region
    $region6: #{mlp_double_forward.1} parent=1 // pred_check
      _
    $region7: #{mlp_double_forward.1} parent=1 // pred_check_branch
      %21 = sbr.rel (0) target = $region9
    $region8: #{mlp_double_forward.1} parent=1 // pred_region
      %s23 = ssub.s32 128, 128
      %24 = vsyncadd [#allocation5], %s23
      %s26 = sshll.u32 [#allocation4], 4
      %s27 = int_to_ptr.vmem [resolvable:$true] %s26
      %29 = dma.hbm_to_vmem [thread:$0]  %s1, 128, %s27, [#allocation5]
    $region9: #{mlp_double_forward.1} parent=1 // pred_fallthru
      _
    // Predicated region
    $region10: #{mlp_double_forward.1} parent=1 // pred_check
      _
    $region11: #{mlp_double_forward.1} parent=1 // pred_check_branch
      %31 = sbr.rel (0) target = $region13
    $region12: #{mlp_double_forward.1} parent=1 // pred_region
      %s33 = ssub.s32 1024, 1024
      %34 = vsyncadd [#allocation5], %s33
      %s35 = sshll.u32 [#allocation6], 4
      %s36 = int_to_ptr.vmem [resolvable:$true] %s35
      %41 = dma.hbm_to_vmem [thread:$0]  %s2, 1024, %s36, [#allocation5], 64, 64, 4
    $region13: #{mlp_double_forward.1} parent=1 // pred_fallthru
      _
    // Predicated region
    $region14: #{mlp_double_forward.1} parent=1 // pred_check
      _
    $region15: #{mlp_double_forward.1} parent=1 // pred_check_branch
      %43 = sbr.rel (0) target = $region17
    $region16: #{mlp_double_forward.1} parent=1 // pred_region
      %44 = dma.done [#allocation3], 128
    $region17: #{mlp_double_forward.1} parent=1 // pred_fallthru
      _
    // Predicated region
    $region18: #{mlp_double_forward.1} parent=1 // pred_check
      _
    $region19: #{mlp_double_forward.1} parent=1 // pred_check_branch
      %46 = sbr.rel (0) target = $region21
    $region20: #{mlp_double_forward.1} parent=1 // pred_region
      %47 = dma.done [#allocation5], 128
    $region21: #{mlp_double_forward.1} parent=1 // pred_fallthru
      _
    // Predicated region
    $region22: #{mlp_double_forward.1} parent=1 // pred_check
      _
    $region23: #{mlp_double_forward.1} parent=1 // pred_check_branch
      %49 = sbr.rel (0) target = $region25
    $region24: #{mlp_double_forward.1} parent=1 // pred_region
      %50 = dma.done [#allocation5], 1024
    $region25: #{mlp_double_forward.1} parent=1 // pred_fallthru
      _
    %v52 = vld [vmem:[#allocation2] sm:$0xff]
    %v53 = vld [vmem:[#allocation4] sm:$0xff]
    %v54 = vsub.f32 %v52, %v53
    %v55 = vld [vmem:[#allocation6] sm:$0xf]
    %v56 = vld [vmem:[#allocation6 + $0x4] sm:$0xf]
    %v57 = vld [vmem:[#allocation6 + $0x8] sm:$0xf]
    %v58 = vld [vmem:[#allocation6 + $0xc] sm:$0xf]
    %v59 = vld [vmem:[#allocation6 + $0x10] sm:$0x1]
    %v60 = vunpack.c.l.bf16 %v59
    %v61 = vpack.c.bf16 %v54, %v54
    %v62 = vlaneseq
    %v63 = vshrl.u32 %v62, 7
    %v64 = vsub.s32 0, %v63
    %v65 = vrot.slane %v60, %v64
    %v70 = vunpack.c.l.b16 %v55
    %v71 = vunpack.c.l.b16 %v56
    %v72 = vunpack.c.l.b16 %v57
    %v73 = vunpack.c.l.b16 %v58
    %v74 = vpack.c.b16 %v71, %v70
    %v75 = vpack.c.b16 %v73, %v72
    %vm78 = vcmask 261120
    %v80 = vsel %vm78, %v61, 0
    %82 = vmatprep.subr.bf16.mxu0 0
    %83 = vmatpush1.bf16.msra.mxu0 %v74
    %84 = vmatprep.subr.bf16.mxu0 0
    %85 = vmatpush1.bf16.msra.mxu0 %v75
    %86 = vmatprep.subr.bf16.mxu0 0
    %87 = vmatpush1.bf16.msra.mxu0 0
    %88 = vmatprep.subr.bf16.mxu0 0
    %89 = vmatpush1.bf16.msra.mxu0 0
    %90 = vmatprep.subr.bf16.mxu0 0
    %91 = vmatpush1.bf16.msra.mxu0 0
    %92 = vmatprep.subr.bf16.mxu0 0
    %93 = vmatpush1.bf16.msra.mxu0 0
    %94 = vmatprep.subr.bf16.mxu0 0
    %95 = vmatpush1.bf16.msra.mxu0 0
    %96 = vmatprep.subr.bf16.mxu0 0
    %97 = vmatpush1.bf16.msra.mxu0 0
    %98 = vmatprep.subr.bf16.mxu0 0
    %99 = vmatpush1.bf16.msra.mxu0 0
    %100 = vmatprep.subr.bf16.mxu0 0
    %101 = vmatpush1.bf16.msra.mxu0 0
    %102 = vmatprep.subr.bf16.mxu0 0
    %103 = vmatpush1.bf16.msra.mxu0 0
    %104 = vmatprep.subr.bf16.mxu0 0
    %105 = vmatpush1.bf16.msra.mxu0 0
    %106 = vmatprep.subr.bf16.mxu0 0
    %107 = vmatpush1.bf16.msra.mxu0 0
    %108 = vmatprep.subr.bf16.mxu0 0
    %109 = vmatpush1.bf16.msra.mxu0 0
    %110 = vmatprep.subr.bf16.mxu0 0
    %111 = vmatpush1.bf16.msra.mxu0 0
    %112 = vmatprep.subr.bf16.mxu0 0
    %113 = vmatpush1.bf16.msra.mxu0 0
    %114 = vmatprep.mubr.bf16.mxu0 0
    %115 = vmatmul.mubr.bf16.gmra.mrb[0].mxu0 %v80
    %v116 = vpop.f32.mrb[0].mxu0
    %v117 = vadd.f32 %v65, %v116
    %v118 = vpop.f32.mrb[0].mxu0
    %v119 = vpop.f32.mrb[0].mxu0
    %v120 = vpop.f32.mrb[0].mxu0
    %121 = vdwg.mxu0
    %v122 = vmax.f32 %v117, 0.0
    %v123 = vld [vmem:[#allocation6 + $0x18] sm:$0xf]
    %v124 = vld [vmem:[#allocation6 + $0x1c] sm:$0xf]
    %v125 = vld [vmem:[#allocation6 + $0x20] sm:$0xf]
    %v126 = vld [vmem:[#allocation6 + $0x24] sm:$0xf]
    %v127 = vld [vmem:[#allocation6 + $0x28] sm:$0x1]
    %v128 = vunpack.c.l.bf16 %v127
    %v129 = vpack.c.bf16 %v122, %v122
    %v130 = vlaneseq
    %v131 = vshrl.u32 %v130, 7
    %v132 = vsub.s32 0, %v131
    %v133 = vrot.slane %v128, %v132
    %v138 = vunpack.c.l.b16 %v123
    %v139 = vunpack.c.l.b16 %v124
    %v140 = vunpack.c.l.b16 %v125
    %v141 = vunpack.c.l.b16 %v126
    %v142 = vpack.c.b16 %v139, %v138
    %v143 = vpack.c.b16 %v141, %v140
    %v147 = vsel %vm78, %v129, 0
    %149 = vmatprep.subr.bf16.mxu0 0
    %150 = vmatpush1.bf16.msra.mxu0 %v142
    %151 = vmatprep.subr.bf16.mxu0 0
    %152 = vmatpush1.bf16.msra.mxu0 %v143
    %153 = vmatprep.subr.bf16.mxu0 0
    %154 = vmatpush1.bf16.msra.mxu0 0
    %155 = vmatprep.subr.bf16.mxu0 0
    %156 = vmatpush1.bf16.msra.mxu0 0
    %157 = vmatprep.subr.bf16.mxu0 0
    %158 = vmatpush1.bf16.msra.mxu0 0
    %159 = vmatprep.subr.bf16.mxu0 0
    %160 = vmatpush1.bf16.msra.mxu0 0
    %161 = vmatprep.subr.bf16.mxu0 0
    %162 = vmatpush1.bf16.msra.mxu0 0
    %163 = vmatprep.subr.bf16.mxu0 0
    %164 = vmatpush1.bf16.msra.mxu0 0
    %165 = vmatprep.subr.bf16.mxu0 0
    %166 = vmatpush1.bf16.msra.mxu0 0
    %167 = vmatprep.subr.bf16.mxu0 0
    %168 = vmatpush1.bf16.msra.mxu0 0
    %169 = vmatprep.subr.bf16.mxu0 0
    %170 = vmatpush1.bf16.msra.mxu0 0
    %171 = vmatprep.subr.bf16.mxu0 0
    %172 = vmatpush1.bf16.msra.mxu0 0
    %173 = vmatprep.subr.bf16.mxu0 0
    %174 = vmatpush1.bf16.msra.mxu0 0
    %175 = vmatprep.subr.bf16.mxu0 0
    %176 = vmatpush1.bf16.msra.mxu0 0
    %177 = vmatprep.subr.bf16.mxu0 0
    %178 = vmatpush1.bf16.msra.mxu0 0
    %179 = vmatprep.subr.bf16.mxu0 0
    %180 = vmatpush1.bf16.msra.mxu0 0
    %181 = vmatprep.mubr.bf16.mxu0 0
    %182 = vmatmul.mubr.bf16.gmra.mrb[0].mxu0 %v147
    %v183 = vpop.f32.mrb[0].mxu0
    %v184 = vadd.f32 %v133, %v183
    %v185 = vpop.f32.mrb[0].mxu0
    %v186 = vpop.f32.mrb[0].mxu0
    %v187 = vpop.f32.mrb[0].mxu0
    %188 = vdwg.mxu0
    %v189 = vmax.f32 %v184, 0.0
    %v190 = vld [vmem:[#allocation6 + $0x30] sm:$0xf]
    %v191 = vld [vmem:[#allocation6 + $0x34] sm:$0xf]
    %v192 = vld [vmem:[#allocation6 + $0x38] sm:$0x1]
    %v193 = vunpack.c.l.bf16 %v192
    %v194 = vpack.c.bf16 %v189, %v189
    %v195 = vlaneseq
    %v196 = vshrl.u32 %v195, 7
    %v197 = vsub.s32 0, %v196
    %v198 = vrot.slane %v193, %v197
    %v201 = vunpack.c.l.b16 %v190
    %v202 = vunpack.c.l.b16 %v191
    %v203 = vpack.c.b16 %v202, %v201
    %vm205 = vcmask 130048
    %v207 = vsel %vm205, %v194, 0
    %209 = vmatprep.subr.bf16.mxu0 0
    %210 = vmatpush1.bf16.msra.mxu0 %v203
    %211 = vmatprep.subr.bf16.mxu0 0
    %212 = vmatpush1.bf16.msra.mxu0 0
    %213 = vmatprep.subr.bf16.mxu0 0
    %214 = vmatpush1.bf16.msra.mxu0 0
    %215 = vmatprep.subr.bf16.mxu0 0
    %216 = vmatpush1.bf16.msra.mxu0 0
    %217 = vmatprep.subr.bf16.mxu0 0
    %218 = vmatpush1.bf16.msra.mxu0 0
    %219 = vmatprep.subr.bf16.mxu0 0
    %220 = vmatpush1.bf16.msra.mxu0 0
    %221 = vmatprep.subr.bf16.mxu0 0
    %222 = vmatpush1.bf16.msra.mxu0 0
    %223 = vmatprep.subr.bf16.mxu0 0
    %224 = vmatpush1.bf16.msra.mxu0 0
    %225 = vmatprep.subr.bf16.mxu0 0
    %226 = vmatpush1.bf16.msra.mxu0 0
    %227 = vmatprep.subr.bf16.mxu0 0
    %228 = vmatpush1.bf16.msra.mxu0 0
    %229 = vmatprep.subr.bf16.mxu0 0
    %230 = vmatpush1.bf16.msra.mxu0 0
    %231 = vmatprep.subr.bf16.mxu0 0
    %232 = vmatpush1.bf16.msra.mxu0 0
    %233 = vmatprep.subr.bf16.mxu0 0
    %234 = vmatpush1.bf16.msra.mxu0 0
    %235 = vmatprep.subr.bf16.mxu0 0
    %236 = vmatpush1.bf16.msra.mxu0 0
    %237 = vmatprep.subr.bf16.mxu0 0
    %238 = vmatpush1.bf16.msra.mxu0 0
    %239 = vmatprep.subr.bf16.mxu0 0
    %240 = vmatpush1.bf16.msra.mxu0 0
    %241 = vmatprep.mubr.bf16.mxu0 0
    %242 = vmatmul.mubr.bf16.gmra.mrb[0].mxu0 %v207
    %v243 = vpop.f32.mrb[0].mxu0
    %v244 = vadd.f32 %v198, %v243
    %v245 = vpop.f32.mrb[0].mxu0
    %v246 = vpop.f32.mrb[0].mxu0
    %v247 = vpop.f32.mrb[0].mxu0
    %248 = vdwg.mxu0
    %249 = vst [vmem:[%s3] sm:$0xff] %v244
    // Predicated region
    $region26: #{mlp_double_forward.1} parent=1 // pred_check
      _
    $region27: #{mlp_double_forward.1} parent=1 // pred_check_branch
      %251 = sbr.rel (0) target = $region29
    $region28: #{mlp_double_forward.1} parent=1 // pred_region
      _
    $region29: #{mlp_double_forward.1} parent=1 // pred_fallthru
      _
    // Predicated region
    $region30: #{mlp_double_forward.1} parent=1 // pred_check
      _
    $region31: #{mlp_double_forward.1} parent=1 // pred_check_branch
      %253 = sbr.rel (0) target = $region33
    $region32: #{mlp_double_forward.1} parent=1 // pred_region
      _
    $region33: #{mlp_double_forward.1} parent=1 // pred_fallthru
      _
    %254 = vsyncpa [#allocation3], 1
    %255 = vsyncpa [#allocation5], 1

</llo_original>
